<compile_context>
chip_gen: v5e
topology: v5e:2x2
jax: 0.10.0
libtpu: 0.0.40
codegen_flags: <defaults>
</compile_context>

<pallas_src>
import functools

import jax
import jax.numpy as jnp
import numpy as np
from jax.experimental import pallas as pl
from jax.experimental.pallas import tpu as pltpu

LAMBDAS = 0.001
_LANES = 128
_SUBLANES = 8
_BLOCK = _LANES * _SUBLANES  # elements in one (8,128) f32 vreg


# ----------------------------------------------------------------------------- kernel
def _regularized_loss_kernel(packed_ref, out_ref, *, pred_rows, seg_rows, inv_n):
    # ---- objective: MSE(y_pred, y_true); zero padding cancels in the diff ----
    y_pred = packed_ref[pl.ds(0, pred_rows), :]
    y_true = packed_ref[pl.ds(pred_rows, pred_rows), :]
    diff = y_pred - y_true
    dacc = (diff * diff).reshape(-1, _SUBLANES, _LANES).sum(axis=0)   # (8,128) VALU fold
    mse = jnp.sum(dacc) * jnp.float32(inv_n)

    # ---- per-layer sum of squares over the packed, zero-padded parameter segments ----
    # Fold each segment into an (8,128) accumulator with pure VALU adds; defer the
    # expensive cross-lane/sublane drain to ONE shared reduction over the stacked
    # accumulators, and issue ONE vectorized sqrt on the EUP.
    row0 = 2 * pred_rows
    accs = []
    for rows in seg_rows:                              # static python loop, static slices
        x = packed_ref[pl.ds(row0, rows), :]           # (8,128)-tile-aligned slice
        accs.append((x * x).reshape(-1, _SUBLANES, _LANES).sum(axis=0))
        row0 += rows
    stacked = jnp.stack(accs, axis=0)                          # (3, 8, 128)
    ssq = stacked.sum(axis=1).sum(axis=-1, keepdims=True)      # (3, 1): one lane drain
    reg = jnp.float32(LAMBDAS) * jnp.sum(jnp.sqrt(ssq))        # one EUP sqrt issue

    out_ref[0, 0] = mse + reg


# ----------------------------------------------------------------------------- packing
def _pack_segment(*arrs):
    """Flatten arrays into a lane-dense (rows, 128) f32 block, zero-padded to a multiple
    of 8 rows so kernel slices stay on (8,128) tile boundaries.  Zero padding does not
    affect the L2 norm (and cancels in the MSE diff)."""
    flat = jnp.concatenate([a.reshape(-1) for a in arrs]).astype(jnp.float32)
    n = int(flat.shape[0])
    rows = pl.cdiv(n, _BLOCK) * _SUBLANES
    flat = jnp.pad(flat, (0, rows * _LANES - n))
    return flat.reshape(rows, _LANES), rows


def _regularized_loss_pallas(y_pred, y_true, w1, b1, w2, b2, w3, b3):
    sp, rp = _pack_segment(y_pred)
    st, rt = _pack_segment(y_true)
    s1, r1 = _pack_segment(w1, b1)
    s2, r2 = _pack_segment(w2, b2)
    s3, r3 = _pack_segment(w3, b3)
    assert rp == rt, "y_pred and y_true must have the same element count"
    packed = jnp.concatenate([sp, st, s1, s2, s3], axis=0)     # (total_rows, 128)

    n_total = int(packed.shape[0]) * _LANES
    n_pred = int(np.prod(y_pred.shape))
    cost = pl.CostEstimate(
        flops=3 * n_total + 16,
        transcendentals=3,
        bytes_accessed=4 * (n_total + 1),
    )

    kernel = functools.partial(
        _regularized_loss_kernel,
        pred_rows=rp,
        seg_rows=(r1, r2, r3),
        inv_n=1.0 / n_pred,
    )
    out = pl.pallas_call(
        kernel,
        out_shape=jax.ShapeDtypeStruct((1, 1), jnp.float32),
        in_specs=[pl.BlockSpec(memory_space=pltpu.MemorySpace.VMEM)],
        out_specs=pl.BlockSpec(memory_space=pltpu.MemorySpace.SMEM),
        compiler_params=pltpu.CompilerParams(allow_input_fusion=[True]),
        cost_estimate=cost,
    )(packed)
    return out[0, 0]


# ------------------------------------------------------------------- differentiable API
@jax.custom_vjp
def regularized_loss(y_pred, y_true, w1, b1, w2, b2, w3, b3):
    """Forward via the fused Pallas kernel; analytic VJP in plain XLA (this is a loss)."""
    return _regularized_loss_pallas(y_pred, y_true, w1, b1, w2, b2, w3, b3)


def _regularized_loss_fwd(y_pred, y_true, w1, b1, w2, b2, w3, b3):
    loss = _regularized_loss_pallas(y_pred, y_true, w1, b1, w2, b2, w3, b3)
    return loss, (y_pred, y_true, w1, b1, w2, b2, w3, b3)


def _regularized_loss_bwd(res, g):
    y_pred, y_true, w1, b1, w2, b2, w3, b3 = res
    inv_n = 1.0 / y_pred.size
    d_pred = g * (2.0 * inv_n) * (y_pred - y_true)
    d_true = -d_pred

    def reg_grads(w, b):
        norm = jnp.sqrt(jnp.sum(w * w) + jnp.sum(b * b) + 1e-24)   # eps guard at ||v||=0
        s = g * jnp.float32(LAMBDAS) / norm
        return s * w, s * b

    dw1, db1 = reg_grads(w1, b1)
    dw2, db2 = reg_grads(w2, b2)
    dw3, db3 = reg_grads(w3, b3)
    return d_pred, d_true, dw1, db1, dw2, db2, dw3, db3


regularized_loss.defvjp(_regularized_loss_fwd, _regularized_loss_bwd)


# --------------------------------------------------------------------------- reference
def _reference(y_pred, y_true, w1, b1, w2, b2, w3, b3):
    mse = jnp.mean((y_pred - y_true) ** 2)

    def reg(w, b):
        v = jnp.concatenate([w.reshape(-1), b.reshape(-1)])
        return LAMBDAS * jnp.linalg.norm(v)

    return mse + reg(w1, b1) + reg(w2, b2) + reg(w3, b3)


if __name__ == "__main__":
    key = jax.random.PRNGKey(0)
    ks = jax.random.split(key, 8)

    # Small synthetic anomaly-detector head: fc1 256->64, fc2 64->32, fc3 32->1.
    B, S = 2, 32           # y_pred: (batch, segments) scores in [0,1]
    D_IN, H1, H2, H3 = 256, 64, 32, 1

    y_pred = jax.nn.sigmoid(jax.random.normal(ks[0], (B, S), jnp.float32))
    y_true = (jax.random.uniform(ks[1], (B, S)) > 0.5).astype(jnp.float32)

    w1 = jax.random.normal(ks[2], (H1, D_IN), jnp.float32) * 0.05
    b1 = jax.random.normal(ks[3], (H1,), jnp.float32) * 0.05
    w2 = jax.random.normal(ks[4], (H2, H1), jnp.float32) * 0.05
    b2 = jax.random.normal(ks[5], (H2,), jnp.float32) * 0.05
    w3 = jax.random.normal(ks[6], (H3, H2), jnp.float32) * 0.05
    b3 = jax.random.normal(ks[7], (H3,), jnp.float32) * 0.05

    args = (y_pred, y_true, w1, b1, w2, b2, w3, b3)

    # Forward check against pure-JAX reference.
    loss = jax.block_until_ready(regularized_loss(*args))
    ref = jax.block_until_ready(_reference(*args))
    assert np.allclose(np.asarray(loss), np.asarray(ref), rtol=1e-5, atol=1e-6), (loss, ref)

    # Gradient check (custom VJP vs autodiff of the reference) — this loss is trained on.
    grads = jax.block_until_ready(
        jax.grad(regularized_loss, argnums=tuple(range(8)))(*args))
    ref_grads = jax.block_until_ready(
        jax.grad(_reference, argnums=tuple(range(8)))(*args))
    for gk, gr in zip(grads, ref_grads):
        assert np.allclose(np.asarray(gk), np.asarray(gr), rtol=1e-4, atol=1e-7), (gk, gr)

    print("KERNEL_OK")
</pallas_src>

<mosaic_0001>
module attributes {stable_mosaic.version = 11 : i64} {
  func.func @_regularized_loss_kernel(%arg0: memref<184x128xf32, #tpu.memory_space<vmem>>, %arg1: memref<1x1xf32, #tpu.memory_space<smem>>) attributes {dimension_semantics = [], scalar_prefetch = 0 : i64, scratch_operands = 0 : i64, tpu.core_type = #tpu.core_type<tc>} {
    %c0 = arith.constant 0 : index
    %c0_0 = arith.constant 0 : index
    %0 = vector.load %arg0[%c0, %c0_0] : memref<184x128xf32, #tpu.memory_space<vmem>>, vector<8x128xf32>
    %c8 = arith.constant 8 : index
    %c0_1 = arith.constant 0 : index
    %1 = vector.load %arg0[%c8, %c0_1] : memref<184x128xf32, #tpu.memory_space<vmem>>, vector<8x128xf32>
    %2 = arith.subf %0, %1 : vector<8x128xf32>
    %3 = arith.mulf %2, %2 : vector<8x128xf32>
    %4 = vector.shape_cast %3 : vector<8x128xf32> to vector<1x8x128xf32>
    %cst = arith.constant dense<0.000000e+00> : vector<8x128xf32>
    %5 = vector.multi_reduction <add>, %4, %cst [0] : vector<1x8x128xf32> to vector<8x128xf32>
    %6 = vector.shape_cast %5 : vector<8x128xf32> to vector<1x8x128xf32>
    %cst_2 = arith.constant dense<0.000000e+00> : vector<1xf32>
    %7 = vector.multi_reduction <add>, %6, %cst_2 [1, 2] : vector<1x8x128xf32> to vector<1xf32>
    %8 = vector.shape_cast %7 : vector<1xf32> to vector<1x1x1xf32>
    %9 = vector.extract %8[0, 0, 0] : f32 from vector<1x1x1xf32>
    %cst_3 = arith.constant 1.562500e-02 : f32
    %10 = arith.mulf %9, %cst_3 : f32
    %c16 = arith.constant 16 : index
    %c0_4 = arith.constant 0 : index
    %11 = vector.load %arg0[%c16, %c0_4] : memref<184x128xf32, #tpu.memory_space<vmem>>, vector<136x128xf32>
    %12 = arith.mulf %11, %11 : vector<136x128xf32>
    %13 = vector.shape_cast %12 : vector<136x128xf32> to vector<17x8x128xf32>
    %cst_5 = arith.constant dense<0.000000e+00> : vector<8x128xf32>
    %14 = vector.multi_reduction <add>, %13, %cst_5 [0] : vector<17x8x128xf32> to vector<8x128xf32>
    %c152 = arith.constant 152 : index
    %c0_6 = arith.constant 0 : index
    %15 = vector.load %arg0[%c152, %c0_6] : memref<184x128xf32, #tpu.memory_space<vmem>>, vector<24x128xf32>
    %16 = arith.mulf %15, %15 : vector<24x128xf32>
    %17 = vector.shape_cast %16 : vector<24x128xf32> to vector<3x8x128xf32>
    %cst_7 = arith.constant dense<0.000000e+00> : vector<8x128xf32>
    %18 = vector.multi_reduction <add>, %17, %cst_7 [0] : vector<3x8x128xf32> to vector<8x128xf32>
    %c176 = arith.constant 176 : index
    %c0_8 = arith.constant 0 : index
    %19 = vector.load %arg0[%c176, %c0_8] : memref<184x128xf32, #tpu.memory_space<vmem>>, vector<8x128xf32>
    %20 = arith.mulf %19, %19 : vector<8x128xf32>
    %21 = vector.shape_cast %20 : vector<8x128xf32> to vector<1x8x128xf32>
    %cst_9 = arith.constant dense<0.000000e+00> : vector<8x128xf32>
    %22 = vector.multi_reduction <add>, %21, %cst_9 [0] : vector<1x8x128xf32> to vector<8x128xf32>
    %23 = vector.shape_cast %14 : vector<8x128xf32> to vector<1x8x128xf32>
    %24 = vector.shape_cast %18 : vector<8x128xf32> to vector<1x8x128xf32>
    %25 = vector.shape_cast %22 : vector<8x128xf32> to vector<1x8x128xf32>
    %26 = tpu.concatenate %23, %24, %25 in 0 : vector<1x8x128xf32>, vector<1x8x128xf32>, vector<1x8x128xf32> -> vector<3x8x128xf32>
    %cst_10 = arith.constant dense<0.000000e+00> : vector<3x128xf32>
    %27 = vector.multi_reduction <add>, %26, %cst_10 [1] : vector<3x8x128xf32> to vector<3x128xf32>
    %cst_11 = arith.constant dense<0.000000e+00> : vector<3xf32>
    %28 = vector.multi_reduction <add>, %27, %cst_11 [1] : vector<3x128xf32> to vector<3xf32>
    %29 = vector.shape_cast %28 : vector<3xf32> to vector<3x1xf32>
    %30 = math.sqrt %29 : vector<3x1xf32>
    %31 = vector.shape_cast %30 : vector<3x1xf32> to vector<1x3x1xf32>
    %cst_12 = arith.constant dense<0.000000e+00> : vector<1xf32>
    %32 = vector.multi_reduction <add>, %31, %cst_12 [1, 2] : vector<1x3x1xf32> to vector<1xf32>
    %33 = vector.shape_cast %32 : vector<1xf32> to vector<1x1x1xf32>
    %34 = vector.extract %33[0, 0, 0] : f32 from vector<1x1x1xf32>
    %cst_13 = arith.constant 1.000000e-03 : f32
    %35 = arith.mulf %cst_13, %34 : f32
    %36 = arith.addf %10, %35 : f32
    %c0_14 = arith.constant 0 : index
    %c0_15 = arith.constant 0 : index
    %37 = memref.load %arg1[%c0_14, %c0_15] : memref<1x1xf32, #tpu.memory_space<smem>>
    memref.store %36, %arg1[%c0_14, %c0_15] : memref<1x1xf32, #tpu.memory_space<smem>>
    return
  }
}

</mosaic_0001>

<llo_original>
// kernel: tpu_custom_call.1
$region0: #{tpu_custom_call.1}
  #allocation0 [shape = 'u32[]', space=smem, size = 0x4, offset = 0x4, fixed_abs, tag = 'smem constant byte address 0x4 - core index']
  #allocation1 [shape = 'u32[72,128]{1,0:T(1,128)}', space=vmem, size = 0x9000, scoped, tag = 'internal scratch']
  %s0 = inlined_call_operand.hbm [shape: f32[184,128], index: 0, kind: input, shape index: {}]
  %s1 = inlined_call_operand.hbm [shape: f32[1,1], index: 1, kind: output, shape index: {}]
  %s2 = sld [smem:[#allocation0]]
  $region18: #{tpu_custom_call.1} parent=0
    _
  %s4 = ssub.s32 1, %s2
  %s5 = scalar_select 0, %s4, %s2
  $region1: #{tpu_custom_call.1} parent=0
    #allocation2 [shape = 'u8[94208]{0}', space=vmem, size = 0x17000, scoped, tag = 'input window, operand 0, single buffered']
    #allocation3 [shape = 's32[1]{0}', space=sflag, size = 0x4, scoped, tag = 'scoped memory for tpu_custom_call.1']
    #allocation4 [shape = 's32[1]{0}', space=sflag, size = 0x4, scoped, tag = 'scoped memory for tpu_custom_call.1']
    #allocation5 [shape = 'u8[512]{0}', space=smem, size = 0x200, scoped, tag = 'output window, operand 0, single buffered']
    %6 = vsyncpa [#allocation3], 0
    %7 = vsyncpa [#allocation4], 0
    // Predicated region
    $region2: #{tpu_custom_call.1} parent=1 // pred_check
      _
    $region3: #{tpu_custom_call.1} parent=1 // pred_check_branch
      %9 = sbr.rel (0) target = $region5
    $region4: #{tpu_custom_call.1} parent=1 // pred_region
      %11 = vsyncadd [#allocation3], 0
      %s12 = sshll.u32 %s0, 4
      %s13 = int_to_ptr.hbm [resolvable:$true] %s12
      %s14 = sshll.u32 [#allocation2], 4
      %s15 = int_to_ptr.vmem [resolvable:$true] %s14
      %20 = dma.hbm_to_vmem [thread:$0]  %s13, 2944, %s15, [#allocation3], 128, 128, 8
    $region5: #{tpu_custom_call.1} parent=1 // pred_fallthru
      _
    // Predicated region
    $region6: #{tpu_custom_call.1} parent=1 // pred_check
      _
    $region7: #{tpu_custom_call.1} parent=1 // pred_check_branch
      %22 = sbr.rel (0) target = $region9
    $region8: #{tpu_custom_call.1} parent=1 // pred_region
      %24 = dma.done [#allocation3], 2944
    $region9: #{tpu_custom_call.1} parent=1 // pred_fallthru
      _
    %v25 = vld [vmem:[#allocation2] sm:$0xff]
    %v26 = vld [vmem:[#allocation2 + $0x8] sm:$0xff]
    %v27 = vsub.f32 %v25, %v26
    %v28 = vmul.f32 %v27, %v27
    %v29 = vadd.f32 %v28, 0.0
    %30 = vadd.xlane.f32.xlu0 %v29
    %v31 = vpop.xlane.xlu0 %30
    %v32 = vrot.slane %v31, 4
    %v33 = vadd.f32 %v31, %v32
    %v34 = vrot.slane %v33, 2
    %v35 = vadd.f32 %v33, %v34
    %v36 = vrot.slane %v35, 1
    %v37 = vadd.f32 %v35, %v36
    %s38 = vtos %v37
    %s39 = smul.f32 %s38, 0.015625
    %v40 = vld [vmem:[#allocation2 + $0x10] sm:$0xff]
    %v41 = vld [vmem:[#allocation2 + $0x18] sm:$0xff]
    %v42 = vld [vmem:[#allocation2 + $0x20] sm:$0xff]
    %v43 = vld [vmem:[#allocation2 + $0x28] sm:$0xff]
    %v44 = vld [vmem:[#allocation2 + $0x30] sm:$0xff]
    %v45 = vld [vmem:[#allocation2 + $0x38] sm:$0xff]
    %v46 = vld [vmem:[#allocation2 + $0x40] sm:$0xff]
    %v47 = vld [vmem:[#allocation2 + $0x48] sm:$0xff]
    %v48 = vld [vmem:[#allocation2 + $0x50] sm:$0xff]
    %v49 = vld [vmem:[#allocation2 + $0x58] sm:$0xff]
    %v50 = vld [vmem:[#allocation2 + $0x60] sm:$0xff]
    %v51 = vld [vmem:[#allocation2 + $0x68] sm:$0xff]
    %v52 = vld [vmem:[#allocation2 + $0x70] sm:$0xff]
    %v53 = vld [vmem:[#allocation2 + $0x78] sm:$0xff]
    %v54 = vld [vmem:[#allocation2 + $0x80] sm:$0xff]
    %v55 = vld [vmem:[#allocation2 + $0x88] sm:$0xff]
    %v56 = vld [vmem:[#allocation2 + $0x90] sm:$0xff]
    %v57 = vmul.f32 %v40, %v40
    %v58 = vmul.f32 %v41, %v41
    %v59 = vmul.f32 %v42, %v42
    %v60 = vmul.f32 %v43, %v43
    %v61 = vmul.f32 %v44, %v44
    %v62 = vmul.f32 %v45, %v45
    %v63 = vmul.f32 %v46, %v46
    %v64 = vmul.f32 %v47, %v47
    %v65 = vmul.f32 %v48, %v48
    %v66 = vmul.f32 %v49, %v49
    %v67 = vmul.f32 %v50, %v50
    %v68 = vmul.f32 %v51, %v51
    %v69 = vmul.f32 %v52, %v52
    %v70 = vmul.f32 %v53, %v53
    %v71 = vmul.f32 %v54, %v54
    %v72 = vmul.f32 %v55, %v55
    %v73 = vmul.f32 %v56, %v56
    %v74 = vadd.f32 %v57, %v58
    %v75 = vadd.f32 %v74, %v59
    %v76 = vadd.f32 %v75, %v60
    %v77 = vadd.f32 %v76, %v61
    %v78 = vadd.f32 %v77, %v62
    %v79 = vadd.f32 %v78, %v63
    %v80 = vadd.f32 %v79, %v64
    %v81 = vadd.f32 %v80, %v65
    %v82 = vadd.f32 %v81, %v66
    %v83 = vadd.f32 %v82, %v67
    %v84 = vadd.f32 %v83, %v68
    %v85 = vadd.f32 %v84, %v69
    %v86 = vadd.f32 %v85, %v70
    %v87 = vadd.f32 %v86, %v71
    %v88 = vadd.f32 %v87, %v72
    %v89 = vadd.f32 %v88, %v73
    %v90 = vld [vmem:[#allocation2 + $0x98] sm:$0xff]
    %v91 = vld [vmem:[#allocation2 + $0xa0] sm:$0xff]
    %v92 = vld [vmem:[#allocation2 + $0xa8] sm:$0xff]
    %v93 = vmul.f32 %v90, %v90
    %v94 = vmul.f32 %v91, %v91
    %v95 = vmul.f32 %v92, %v92
    %v96 = vadd.f32 %v93, %v94
    %v97 = vadd.f32 %v96, %v95
    %v98 = vld [vmem:[#allocation2 + $0xb0] sm:$0xff]
    %v99 = vmul.f32 %v98, %v98
    %v100 = vadd.f32 %v99, 0.0
    %v101 = vrot.slane %v89, 4
    %v102 = vadd.f32 %v89, %v101
    %v103 = vrot.slane %v102, 2
    %v104 = vadd.f32 %v102, %v103
    %v105 = vrot.slane %v104, 1
    %v106 = vadd.f32 %v104, %v105
    %v107 = vrot.slane %v97, 4
    %v108 = vadd.f32 %v97, %v107
    %v109 = vrot.slane %v108, 2
    %v110 = vadd.f32 %v108, %v109
    %v111 = vrot.slane %v110, 1
    %v112 = vadd.f32 %v110, %v111
    %v113 = vrot.slane %v100, 4
    %v114 = vadd.f32 %v100, %v113
    %v115 = vrot.slane %v114, 2
    %v116 = vadd.f32 %v114, %v115
    %v117 = vrot.slane %v116, 1
    %v118 = vadd.f32 %v116, %v117
    %vm122 = vcmask 1041409
    %v123 = vsel %vm122, %v112, %v106
    %vm124 = vcmask 1042434
    %v125 = vsel %vm124, %v118, %v123
    %vm127 = vcmask 1042432
    %v128 = vsel %vm127, %v125, 0.0
    %129 = vadd.xlane.f32.xlu0 %v128
    %v130 = vpop.xlane.xlu0 %129
    %v131 = vrsqrt.pop %v130
    %v132 = vmul.f32 %v131, %v130
    %v133 = vmul.f32 %v132, %v131
    %v134 = vmul.f32 0.5, %v133
    %v135 = vsub.f32 1.5, %v134
    %v136 = vmul.f32 %v131, %v135
    %v137 = vmul.f32 %v130, %v136
    %vm138 = vcmp.eq.f32.partialorder %v130, inf
    %v139 = vsel %vm138, %v130, %v137
    %vm140 = vcmp.eq.f32.partialorder %v130, 0.0
    %v141 = vand.u32 %v130, 2147483648
    %v142 = vsel %vm140, %v141, %v139
    %vm143 = vcmask 2048
    %v144 = vsel %vm143, %v142, 0.0
    %145 = vadd.xlane.f32.xlu0 %v144
    %v146 = vpop.xlane.xlu0 %145
    %v147 = vrot.slane %v146, 4
    %v148 = vadd.f32 %v146, %v147
    %v149 = vrot.slane %v148, 2
    %v150 = vadd.f32 %v148, %v149
    %v151 = vrot.slane %v150, 1
    %v152 = vadd.f32 %v150, %v151
    %s153 = vtos %v152
    %s154 = smul.f32 %s153, 0.001
    %s155 = sadd.f32 %s39, %s154
    %s156 = scalar_lea.smem [#allocation5], 0
    %157 = sst [smem:[%s156]] %s155
    // Predicated region
    $region10: #{tpu_custom_call.1} parent=1 // pred_check
      _
    $region11: #{tpu_custom_call.1} parent=1 // pred_check_branch
      %159 = sbr.rel (0) target = $region13
    $region12: #{tpu_custom_call.1} parent=1 // pred_region
      %161 = vsyncadd [#allocation4], 0
      %s163 = sshll.u32 %s1, 4
      %s164 = int_to_ptr.hbm [resolvable:$true] %s163
      %166 = dma.smem_to_hbm [#allocation5], 16, %s164, [#allocation4]
    $region13: #{tpu_custom_call.1} parent=1 // pred_fallthru
      _
    // Predicated region
    $region14: #{tpu_custom_call.1} parent=1 // pred_check
      _
    $region15: #{tpu_custom_call.1} parent=1 // pred_check_branch
      %168 = sbr.rel (0) target = $region17
    $region16: #{tpu_custom_call.1} parent=1 // pred_region
      %170 = dma.done [#allocation4], 16
    $region17: #{tpu_custom_call.1} parent=1 // pred_fallthru
      _
    %171 = sfence
    %172 = vsyncpa [#allocation3], 1
    %173 = vsyncpa [#allocation4], 1

</llo_original>
